<compile_context>
chip_gen: v7x
topology: tpu7x:2x2x1
jax: 0.10.0
libtpu: 0.0.40
codegen_flags: <defaults>
</compile_context>

<pallas_src>
import functools

import jax
import jax.numpy as jnp
from jax.experimental import pallas as pl
from jax.experimental.pallas import tpu as pltpu

K = 3  # TAGConv default number of hops


def _tagnet_kernel(a_ref, x_ref, p_ref, o_ref, *,
                   hidden, n_classes, w1_rows, w2_off, w2_rows):
    A = a_ref[...]            # (N, N) dense normalized adjacency
    x = x_ref[...]            # (N, F_in)
    p = p_ref[...]            # packed parameters
    N = x.shape[0]
    ones = jnp.ones((N, 1), jnp.float32)

    # ---- TAGConv 1 (hop-stacked, bias folded via constant-1 column) ----
    h1 = jnp.dot(A, x, preferred_element_type=jnp.float32)
    h2 = jnp.dot(A, h1, preferred_element_type=jnp.float32)
    h3 = jnp.dot(A, h2, preferred_element_type=jnp.float32)
    P1 = jnp.concatenate([x, h1, h2, h3, ones], axis=-1)            # (N, (K+1)*F_in + 1)
    w1s = p[0:w1_rows, 0:hidden]                                    # [W1_0; ...; W1_K; b1]
    z = jnp.dot(P1, w1s, preferred_element_type=jnp.float32)        # (N, hidden)
    z = jnp.maximum(z, 0.0)   # ReLU; F.dropout(training=False) is identity in eval mode

    # ---- TAGConv 2 + folded endLinear (hop-stacked) ----
    g1 = jnp.dot(A, z, preferred_element_type=jnp.float32)
    g2 = jnp.dot(A, g1, preferred_element_type=jnp.float32)
    g3 = jnp.dot(A, g2, preferred_element_type=jnp.float32)
    P2 = jnp.concatenate([z, g1, g2, g3, ones], axis=-1)            # (N, (K+1)*hidden + 1)
    w2s = p[w2_off:w2_off + w2_rows, 0:n_classes]                   # [W2_k@Wl; b2@Wl + bl]
    y = jnp.dot(P2, w2s, preferred_element_type=jnp.float32)        # (N, C)
    o_ref[...] = jax.nn.sigmoid(y)


def pack_params(w1, b1, w2, b2, wl, bl):
    """Fold endLinear into conv2 and pack everything into one small f32 array.

    w1: (K+1, F_in, hidden)   b1: (1, hidden)
    w2: (K+1, hidden, C)      b2: (1, C)
    wl: (C, C) stored as (in, out) i.e. W^T of nn.Linear     bl: (1, C)
    """
    k1, f_in, hidden = w1.shape
    n_classes = w2.shape[-1]
    w1_rows = k1 * f_in + 1
    w2_rows = k1 * hidden + 1
    w2_off = ((w1_rows + 7) // 8) * 8  # sublane-align second block

    w1s = jnp.concatenate([w1.reshape(k1 * f_in, hidden),
                           b1.reshape(1, hidden)], axis=0)          # (w1_rows, hidden)
    w2f = jnp.einsum('kho,oc->khc', w2, wl)                         # W2_k' = W2_k @ Wl
    b2f = b2.reshape(1, n_classes) @ wl + bl.reshape(1, n_classes)  # b2' = b2 @ Wl + bl
    w2s = jnp.concatenate([w2f.reshape(k1 * hidden, n_classes), b2f], axis=0)

    cols = max(hidden, n_classes)
    params = jnp.zeros((w2_off + w2_rows, cols), jnp.float32)
    params = params.at[0:w1_rows, 0:hidden].set(w1s)
    params = params.at[w2_off:w2_off + w2_rows, 0:n_classes].set(w2s)
    meta = dict(hidden=hidden, n_classes=n_classes,
                w1_rows=w1_rows, w2_off=w2_off, w2_rows=w2_rows)
    return params, meta


def gcn_norm_dense(edge_index, edge_weight, num_nodes):
    """Dense D^{-1/2} A D^{-1/2} (no self loops); A[target, source] = w. Plain JAX glue."""
    row, col = edge_index[0], edge_index[1]          # source, target
    deg = jnp.zeros((num_nodes,), jnp.float32).at[col].add(edge_weight)
    deg_inv_sqrt = jnp.where(deg > 0, jax.lax.rsqrt(jnp.maximum(deg, 1e-30)), 0.0)
    w_norm = deg_inv_sqrt[row] * edge_weight * deg_inv_sqrt[col]
    A = jnp.zeros((num_nodes, num_nodes), jnp.float32).at[col, row].add(w_norm)
    return A


def make_tagnet_forward(num_nodes, meta):
    kernel = functools.partial(_tagnet_kernel, **meta)
    vmem = lambda: pl.BlockSpec(memory_space=pltpu.MemorySpace.VMEM)
    call = pl.pallas_call(
        kernel,
        out_shape=jax.ShapeDtypeStruct((num_nodes, meta['n_classes']), jnp.float32),
        in_specs=[vmem(), vmem(), vmem()],
        out_specs=vmem(),
        cost_estimate=pl.CostEstimate(flops=4096, transcendentals=num_nodes,
                                      bytes_accessed=2048),
    )

    @jax.jit
    def fwd(edge_index, edge_weight, x, params):
        A = gcn_norm_dense(edge_index, edge_weight, num_nodes)
        return call(A, x, params)

    return fwd


def reference_forward(A, x, w1, b1, w2, b2, wl, bl):
    """Pure-JAX reference with the original (un-folded) TAGNet_bench structure."""
    def tagconv(h, w, b):
        out = h @ w[0]
        hk = h
        for k in range(1, K + 1):
            hk = A @ hk
            out = out + hk @ w[k]
        return out + b
    h = jax.nn.relu(tagconv(x, w1, b1))
    h = tagconv(h, w2, b2)
    h = h @ wl + bl
    return jax.nn.sigmoid(h)


if __name__ == "__main__":
    num_nodes = 10
    num_node_features = 1
    num_classes = 1
    hidden = 4
    num_edges = 30

    key = jax.random.PRNGKey(0)
    k_x, k_src, k_dst, k_w, k_w1, k_b1, k_w2, k_b2, k_wl, k_bl = jax.random.split(key, 10)

    # Synthetic graph data (deterministic).
    x = jax.random.normal(k_x, (num_nodes, num_node_features), dtype=jnp.float32)
    src = jax.random.randint(k_src, (num_edges,), 0, num_nodes, dtype=jnp.int32)
    dst = jax.random.randint(k_dst, (num_edges,), 0, num_nodes, dtype=jnp.int32)
    edge_index = jnp.stack([src, dst], axis=0)                       # (2, E)
    edge_weight = jax.random.uniform(k_w, (num_edges,), dtype=jnp.float32,
                                     minval=0.1, maxval=1.0)

    # Deterministic synthetic parameters (shapes match TAGConv(K=3) + nn.Linear).
    w1 = jax.random.normal(k_w1, (K + 1, num_node_features, hidden), dtype=jnp.float32) * 0.5
    b1 = jax.random.normal(k_b1, (1, hidden), dtype=jnp.float32) * 0.1
    w2 = jax.random.normal(k_w2, (K + 1, hidden, num_classes), dtype=jnp.float32) * 0.5
    b2 = jax.random.normal(k_b2, (1, num_classes), dtype=jnp.float32) * 0.1
    wl = jax.random.normal(k_wl, (num_classes, num_classes), dtype=jnp.float32) * 0.5  # W^T layout
    bl = jax.random.normal(k_bl, (1, num_classes), dtype=jnp.float32) * 0.1

    params, meta = pack_params(w1, b1, w2, b2, wl, bl)
    forward = make_tagnet_forward(num_nodes, meta)

    out = forward(edge_index, edge_weight, x, params)
    out = jax.block_until_ready(out)

    # Correctness check against the un-folded reference formulation.
    A = gcn_norm_dense(edge_index, edge_weight, num_nodes)
    ref = reference_forward(A, x, w1, b1, w2, b2, wl, bl)

    assert out.shape == (num_nodes, num_classes)
    assert bool(jnp.all(jnp.isfinite(out)))
    assert bool(jnp.all((out >= 0.0) & (out <= 1.0)))   # sigmoid output range
    assert bool(jnp.allclose(out, ref, rtol=2e-4, atol=2e-4))
    print("KERNEL_OK")
</pallas_src>

<mosaic_0001>
module attributes {stable_mosaic.version = 11 : i64} {
  func.func @_tagnet_kernel(%arg0: memref<10x10xf32, #tpu.memory_space<vmem>>, %arg1: memref<10x1xf32, #tpu.memory_space<vmem>>, %arg2: memref<25x4xf32, #tpu.memory_space<vmem>>, %arg3: memref<10x1xf32, #tpu.memory_space<vmem>>) attributes {dimension_semantics = [], scalar_prefetch = 0 : i64, scratch_operands = 0 : i64, tpu.core_type = #tpu.core_type<tc>} {
    %c0 = arith.constant 0 : index
    %c0_0 = arith.constant 0 : index
    %0 = vector.load %arg0[%c0, %c0_0] : memref<10x10xf32, #tpu.memory_space<vmem>>, vector<10x10xf32>
    %c0_1 = arith.constant 0 : index
    %c0_2 = arith.constant 0 : index
    %1 = vector.load %arg1[%c0_1, %c0_2] : memref<10x1xf32, #tpu.memory_space<vmem>>, vector<10x1xf32>
    %c0_3 = arith.constant 0 : index
    %c0_4 = arith.constant 0 : index
    %2 = vector.load %arg2[%c0_3, %c0_4] : memref<25x4xf32, #tpu.memory_space<vmem>>, vector<25x4xf32>
    %cst = arith.constant 1.000000e+00 : f32
    %3 = vector.broadcast %cst : f32 to vector<10x1xf32>
    %cst_5 = arith.constant dense<0.000000e+00> : vector<10x1xf32>
    %4 = tpu.matmul %0, %1, %cst_5 {dimension_numbers = #tpu.dot_dimension_numbers<[1], [0], [0], [1], [0, 0, 1, 1], [], []>} : vector<10x10xf32>, vector<10x1xf32>, vector<10x1xf32> -> vector<10x1xf32>
    %cst_6 = arith.constant dense<0.000000e+00> : vector<10x1xf32>
    %5 = tpu.matmul %0, %4, %cst_6 {dimension_numbers = #tpu.dot_dimension_numbers<[1], [0], [0], [1], [0, 0, 1, 1], [], []>} : vector<10x10xf32>, vector<10x1xf32>, vector<10x1xf32> -> vector<10x1xf32>
    %cst_7 = arith.constant dense<0.000000e+00> : vector<10x1xf32>
    %6 = tpu.matmul %0, %5, %cst_7 {dimension_numbers = #tpu.dot_dimension_numbers<[1], [0], [0], [1], [0, 0, 1, 1], [], []>} : vector<10x10xf32>, vector<10x1xf32>, vector<10x1xf32> -> vector<10x1xf32>
    %7 = tpu.concatenate %1, %4, %5, %6, %3 in 1 : vector<10x1xf32>, vector<10x1xf32>, vector<10x1xf32>, vector<10x1xf32>, vector<10x1xf32> -> vector<10x5xf32>
    %8 = vector.extract_strided_slice %2 {offsets = [0, 0], sizes = [5, 4], strides = [1, 1]} : vector<25x4xf32> to vector<5x4xf32>
    %cst_8 = arith.constant dense<0.000000e+00> : vector<10x4xf32>
    %9 = tpu.matmul %7, %8, %cst_8 {dimension_numbers = #tpu.dot_dimension_numbers<[1], [0], [0], [1], [0, 0, 1, 1], [], []>} : vector<10x5xf32>, vector<5x4xf32>, vector<10x4xf32> -> vector<10x4xf32>
    %cst_9 = arith.constant 0.000000e+00 : f32
    %10 = vector.broadcast %cst_9 : f32 to vector<10x4xf32>
    %11 = arith.maximumf %9, %10 : vector<10x4xf32>
    %cst_10 = arith.constant dense<0.000000e+00> : vector<10x4xf32>
    %12 = tpu.matmul %0, %11, %cst_10 {dimension_numbers = #tpu.dot_dimension_numbers<[1], [0], [0], [1], [0, 0, 1, 1], [], []>} : vector<10x10xf32>, vector<10x4xf32>, vector<10x4xf32> -> vector<10x4xf32>
    %cst_11 = arith.constant dense<0.000000e+00> : vector<10x4xf32>
    %13 = tpu.matmul %0, %12, %cst_11 {dimension_numbers = #tpu.dot_dimension_numbers<[1], [0], [0], [1], [0, 0, 1, 1], [], []>} : vector<10x10xf32>, vector<10x4xf32>, vector<10x4xf32> -> vector<10x4xf32>
    %cst_12 = arith.constant dense<0.000000e+00> : vector<10x4xf32>
    %14 = tpu.matmul %0, %13, %cst_12 {dimension_numbers = #tpu.dot_dimension_numbers<[1], [0], [0], [1], [0, 0, 1, 1], [], []>} : vector<10x10xf32>, vector<10x4xf32>, vector<10x4xf32> -> vector<10x4xf32>
    %15 = tpu.concatenate %11, %12, %13, %14, %3 in 1 : vector<10x4xf32>, vector<10x4xf32>, vector<10x4xf32>, vector<10x4xf32>, vector<10x1xf32> -> vector<10x17xf32>
    %16 = vector.extract_strided_slice %2 {offsets = [8, 0], sizes = [17, 1], strides = [1, 1]} : vector<25x4xf32> to vector<17x1xf32>
    %cst_13 = arith.constant dense<0.000000e+00> : vector<10x1xf32>
    %17 = tpu.matmul %15, %16, %cst_13 {dimension_numbers = #tpu.dot_dimension_numbers<[1], [0], [0], [1], [0, 0, 1, 1], [], []>} : vector<10x17xf32>, vector<17x1xf32>, vector<10x1xf32> -> vector<10x1xf32>
    %18 = arith.negf %17 : vector<10x1xf32>
    %19 = math.exp %18 : vector<10x1xf32>
    %cst_14 = arith.constant 1.000000e+00 : f32
    %20 = vector.broadcast %cst_14 : f32 to vector<10x1xf32>
    %21 = arith.addf %20, %19 : vector<10x1xf32>
    %22 = arith.divf %20, %21 : vector<10x1xf32>
    %c0_15 = arith.constant 0 : index
    %c0_16 = arith.constant 0 : index
    %23 = vector.load %arg3[%c0_15, %c0_16] : memref<10x1xf32, #tpu.memory_space<vmem>>, vector<10x1xf32>
    tpu.vector_store %arg3[%c0_15, %c0_16], %22 {strides = array<i32>} : memref<10x1xf32, #tpu.memory_space<vmem>>, vector<10x1xf32>,
    return
  }
}

</mosaic_0001>

<llo_original>
// kernel: fwd.1
$region0: #{fwd.1}
  #allocation0 [shape = 'u32[]', space=smem, size = 0x4, offset = 0x4, fixed_abs, tag = 'smem constant byte address 0x4 - core index']
  #allocation1 [shape = 'u32[144,128]{1,0:T(1,128)}', space=vmem, size = 0x12000, scoped, tag = 'internal scratch']
  %s0 = inlined_call_operand.vmem [shape: f32[10,10], index: 0, kind: input, shape index: {}]
  %s1 = inlined_call_operand.vmem [shape: f32[10,1], index: 1, kind: input, shape index: {}]
  %s2 = inlined_call_operand.vmem [shape: f32[25,4], index: 2, kind: input, shape index: {}]
  %s3 = inlined_call_operand.vmem [shape: f32[10,1], index: 3, kind: output, shape index: {}]
  %s4 = sld [smem:[#allocation0]]
  $region22: #{fwd.1} parent=0
    _
  %s6 = ssub.s32 1, %s4
  %s7 = scalar_select 0, %s6, %s4
  // Predicated region
  $region2: #{fwd.1} parent=0 // pred_check
    _
  $region3: #{fwd.1} parent=0 // pred_check_branch
    %9 = sbr.rel (0) target = $region5
  $region4: #{fwd.1} parent=0 // pred_region
    _
  $region5: #{fwd.1} parent=0 // pred_fallthru
    _
  // Predicated region
  $region6: #{fwd.1} parent=0 // pred_check
    _
  $region7: #{fwd.1} parent=0 // pred_check_branch
    %11 = sbr.rel (0) target = $region9
  $region8: #{fwd.1} parent=0 // pred_region
    _
  $region9: #{fwd.1} parent=0 // pred_fallthru
    _
  // Predicated region
  $region10: #{fwd.1} parent=0 // pred_check
    _
  $region11: #{fwd.1} parent=0 // pred_check_branch
    %13 = sbr.rel (0) target = $region13
  $region12: #{fwd.1} parent=0 // pred_region
    _
  $region13: #{fwd.1} parent=0 // pred_fallthru
    _
  %v14 = vld [vmem:[%s0] sm:$0xff]
  %v15 = vld [vmem:[%s0 + $0x8] sm:$0x3]
  %v16 = vld [vmem:[%s1] sm:$0xff]
  %v17 = vld [vmem:[%s1 + $0x8] sm:$0x3]
  %v18 = vld [vmem:[%s2] sm:$0xff]
  %v19 = vld [vmem:[%s2 + $0x8] sm:$0xff]
  %v20 = vld [vmem:[%s2 + $0x10] sm:$0xff]
  %v21 = vld [vmem:[%s2 + $0x18] sm:$0x1]
  %vm22 = vcmask 80896
  %v24 = vsel %vm22, %v14, 0
  %v27 = vsel %vm22, %v15, 0
  %vm29 = vcmask 1041408
  %v31 = vsel %vm29, %v17, 0
  %33 = vmatprep.subr.mxu0 0.0
  %34 = vmatpush1.msra.mxu0 %v16
  %35 = vmatprep.subr.mxu0 0.0
  %36 = vmatpush1.msra.mxu0 %v31
  %37 = vmatprep.subr.mxu0 0.0
  %38 = vmatpush1.msra.mxu0 0.0
  %39 = vmatprep.subr.mxu0 0.0
  %40 = vmatpush1.msra.mxu0 0.0
  %41 = vmatprep.subr.mxu0 0.0
  %42 = vmatpush1.msra.mxu0 0.0
  %43 = vmatprep.subr.mxu0 0.0
  %44 = vmatpush1.msra.mxu0 0.0
  %45 = vmatprep.subr.mxu0 0.0
  %46 = vmatpush1.msra.mxu0 0.0
  %47 = vmatprep.subr.mxu0 0.0
  %48 = vmatpush1.msra.mxu0 0.0
  %49 = vmatprep.subr.mxu0 0.0
  %50 = vmatpush1.msra.mxu0 0.0
  %51 = vmatprep.subr.mxu0 0.0
  %52 = vmatpush1.msra.mxu0 0.0
  %53 = vmatprep.subr.mxu0 0.0
  %54 = vmatpush1.msra.mxu0 0.0
  %55 = vmatprep.subr.mxu0 0.0
  %56 = vmatpush1.msra.mxu0 0.0
  %57 = vmatprep.subr.mxu0 0.0
  %58 = vmatpush1.msra.mxu0 0.0
  %59 = vmatprep.subr.mxu0 0.0
  %60 = vmatpush1.msra.mxu0 0.0
  %61 = vmatprep.subr.mxu0 0.0
  %62 = vmatpush1.msra.mxu0 0.0
  %63 = vmatprep.subr.mxu0 0.0
  %64 = vmatpush1.msra.mxu0 0.0
  %65 = vmatprep.subr.mxu0 0.0
  %66 = vmatpush1.msra.mxu0 0.0
  %67 = vmatprep.subr.mxu0 0.0
  %68 = vmatpush1.msra.mxu0 0.0
  %69 = vmatprep.subr.mxu0 0.0
  %70 = vmatpush1.msra.mxu0 0.0
  %71 = vmatprep.subr.mxu0 0.0
  %72 = vmatpush1.msra.mxu0 0.0
  %73 = vmatprep.subr.mxu0 0.0
  %74 = vmatpush1.msra.mxu0 0.0
  %75 = vmatprep.subr.mxu0 0.0
  %76 = vmatpush1.msra.mxu0 0.0
  %77 = vmatprep.subr.mxu0 0.0
  %78 = vmatpush1.msra.mxu0 0.0
  %79 = vmatprep.subr.mxu0 0.0
  %80 = vmatpush1.msra.mxu0 0.0
  %81 = vmatprep.subr.mxu0 0.0
  %82 = vmatpush1.msra.mxu0 0.0
  %83 = vmatprep.subr.mxu0 0.0
  %84 = vmatpush1.msra.mxu0 0.0
  %85 = vmatprep.subr.mxu0 0.0
  %86 = vmatpush1.msra.mxu0 0.0
  %87 = vmatprep.subr.mxu0 0.0
  %88 = vmatpush1.msra.mxu0 0.0
  %89 = vmatprep.subr.mxu0 0.0
  %90 = vmatpush1.msra.mxu0 0.0
  %91 = vmatprep.subr.mxu0 0.0
  %92 = vmatpush1.msra.mxu0 0.0
  %93 = vmatprep.subr.mxu0 0.0
  %94 = vmatpush1.msra.mxu0 0.0
  %95 = vmatprep.subr.mxu0 0.0
  %96 = vmatpush1.msra.mxu0 0.0
  %97 = vmatprep.mubr.f32.mxu0 0.0
  %98 = vmatmul.mubr.f32.gmra.mrb[0].mxu0 %v24
  %v99 = vpop.f32.mrb[0].mxu0
  %v100 = vadd.f32 0.0, %v99
  %v101 = vpop.f32.mrb[0].mxu0
  %102 = vmatprep.mubr.f32.mxu0 0.0
  %103 = vmatmul.mubr.f32.gmra.mrb[0].mxu0 %v27
  %v104 = vpop.f32.mrb[0].mxu0
  %v105 = vadd.f32 0.0, %v104
  %v106 = vpop.f32.mrb[0].mxu0
  %107 = vdwg.mxu0
  %v109 = vsel %vm29, %v105, 0
  %111 = vmatprep.subr.mxu0 0.0
  %112 = vmatpush1.msra.mxu0 %v100
  %113 = vmatprep.subr.mxu0 0.0
  %114 = vmatpush1.msra.mxu0 %v109
  %115 = vmatprep.subr.mxu0 0.0
  %116 = vmatpush1.msra.mxu0 0.0
  %117 = vmatprep.subr.mxu0 0.0
  %118 = vmatpush1.msra.mxu0 0.0
  %119 = vmatprep.subr.mxu0 0.0
  %120 = vmatpush1.msra.mxu0 0.0
  %121 = vmatprep.subr.mxu0 0.0
  %122 = vmatpush1.msra.mxu0 0.0
  %123 = vmatprep.subr.mxu0 0.0
  %124 = vmatpush1.msra.mxu0 0.0
  %125 = vmatprep.subr.mxu0 0.0
  %126 = vmatpush1.msra.mxu0 0.0
  %127 = vmatprep.subr.mxu0 0.0
  %128 = vmatpush1.msra.mxu0 0.0
  %129 = vmatprep.subr.mxu0 0.0
  %130 = vmatpush1.msra.mxu0 0.0
  %131 = vmatprep.subr.mxu0 0.0
  %132 = vmatpush1.msra.mxu0 0.0
  %133 = vmatprep.subr.mxu0 0.0
  %134 = vmatpush1.msra.mxu0 0.0
  %135 = vmatprep.subr.mxu0 0.0
  %136 = vmatpush1.msra.mxu0 0.0
  %137 = vmatprep.subr.mxu0 0.0
  %138 = vmatpush1.msra.mxu0 0.0
  %139 = vmatprep.subr.mxu0 0.0
  %140 = vmatpush1.msra.mxu0 0.0
  %141 = vmatprep.subr.mxu0 0.0
  %142 = vmatpush1.msra.mxu0 0.0
  %143 = vmatprep.subr.mxu0 0.0
  %144 = vmatpush1.msra.mxu0 0.0
  %145 = vmatprep.subr.mxu0 0.0
  %146 = vmatpush1.msra.mxu0 0.0
  %147 = vmatprep.subr.mxu0 0.0
  %148 = vmatpush1.msra.mxu0 0.0
  %149 = vmatprep.subr.mxu0 0.0
  %150 = vmatpush1.msra.mxu0 0.0
  %151 = vmatprep.subr.mxu0 0.0
  %152 = vmatpush1.msra.mxu0 0.0
  %153 = vmatprep.subr.mxu0 0.0
  %154 = vmatpush1.msra.mxu0 0.0
  %155 = vmatprep.subr.mxu0 0.0
  %156 = vmatpush1.msra.mxu0 0.0
  %157 = vmatprep.subr.mxu0 0.0
  %158 = vmatpush1.msra.mxu0 0.0
  %159 = vmatprep.subr.mxu0 0.0
  %160 = vmatpush1.msra.mxu0 0.0
  %161 = vmatprep.subr.mxu0 0.0
  %162 = vmatpush1.msra.mxu0 0.0
  %163 = vmatprep.subr.mxu0 0.0
  %164 = vmatpush1.msra.mxu0 0.0
  %165 = vmatprep.subr.mxu0 0.0
  %166 = vmatpush1.msra.mxu0 0.0
  %167 = vmatprep.subr.mxu0 0.0
  %168 = vmatpush1.msra.mxu0 0.0
  %169 = vmatprep.subr.mxu0 0.0
  %170 = vmatpush1.msra.mxu0 0.0
  %171 = vmatprep.subr.mxu0 0.0
  %172 = vmatpush1.msra.mxu0 0.0
  %173 = vmatprep.subr.mxu0 0.0
  %174 = vmatpush1.msra.mxu0 0.0
  %175 = vmatprep.mubr.f32.mxu0 0.0
  %176 = vmatmul.mubr.f32.gmra.mrb[0].mxu0 %v24
  %v177 = vpop.f32.mrb[0].mxu0
  %v178 = vadd.f32 0.0, %v177
  %v179 = vpop.f32.mrb[0].mxu0
  %180 = vmatprep.mubr.f32.mxu0 0.0
  %181 = vmatmul.mubr.f32.gmra.mrb[0].mxu0 %v27
  %v182 = vpop.f32.mrb[0].mxu0
  %v183 = vadd.f32 0.0, %v182
  %v184 = vpop.f32.mrb[0].mxu0
  %185 = vdwg.mxu0
  %v187 = vsel %vm29, %v183, 0
  %189 = vmatprep.subr.mxu0 0.0
  %190 = vmatpush1.msra.mxu0 %v178
  %191 = vmatprep.subr.mxu0 0.0
  %192 = vmatpush1.msra.mxu0 %v187
  %193 = vmatprep.subr.mxu0 0.0
  %194 = vmatpush1.msra.mxu0 0.0
  %195 = vmatprep.subr.mxu0 0.0
  %196 = vmatpush1.msra.mxu0 0.0
  %197 = vmatprep.subr.mxu0 0.0
  %198 = vmatpush1.msra.mxu0 0.0
  %199 = vmatprep.subr.mxu0 0.0
  %200 = vmatpush1.msra.mxu0 0.0
  %201 = vmatprep.subr.mxu0 0.0
  %202 = vmatpush1.msra.mxu0 0.0
  %203 = vmatprep.subr.mxu0 0.0
  %204 = vmatpush1.msra.mxu0 0.0
  %205 = vmatprep.subr.mxu0 0.0
  %206 = vmatpush1.msra.mxu0 0.0
  %207 = vmatprep.subr.mxu0 0.0
  %208 = vmatpush1.msra.mxu0 0.0
  %209 = vmatprep.subr.mxu0 0.0
  %210 = vmatpush1.msra.mxu0 0.0
  %211 = vmatprep.subr.mxu0 0.0
  %212 = vmatpush1.msra.mxu0 0.0
  %213 = vmatprep.subr.mxu0 0.0
  %214 = vmatpush1.msra.mxu0 0.0
  %215 = vmatprep.subr.mxu0 0.0
  %216 = vmatpush1.msra.mxu0 0.0
  %217 = vmatprep.subr.mxu0 0.0
  %218 = vmatpush1.msra.mxu0 0.0
  %219 = vmatprep.subr.mxu0 0.0
  %220 = vmatpush1.msra.mxu0 0.0
  %221 = vmatprep.subr.mxu0 0.0
  %222 = vmatpush1.msra.mxu0 0.0
  %223 = vmatprep.subr.mxu0 0.0
  %224 = vmatpush1.msra.mxu0 0.0
  %225 = vmatprep.subr.mxu0 0.0
  %226 = vmatpush1.msra.mxu0 0.0
  %227 = vmatprep.subr.mxu0 0.0
  %228 = vmatpush1.msra.mxu0 0.0
  %229 = vmatprep.subr.mxu0 0.0
  %230 = vmatpush1.msra.mxu0 0.0
  %231 = vmatprep.subr.mxu0 0.0
  %232 = vmatpush1.msra.mxu0 0.0
  %233 = vmatprep.subr.mxu0 0.0
  %234 = vmatpush1.msra.mxu0 0.0
  %235 = vmatprep.subr.mxu0 0.0
  %236 = vmatpush1.msra.mxu0 0.0
  %237 = vmatprep.subr.mxu0 0.0
  %238 = vmatpush1.msra.mxu0 0.0
  %239 = vmatprep.subr.mxu0 0.0
  %240 = vmatpush1.msra.mxu0 0.0
  %241 = vmatprep.subr.mxu0 0.0
  %242 = vmatpush1.msra.mxu0 0.0
  %243 = vmatprep.subr.mxu0 0.0
  %244 = vmatpush1.msra.mxu0 0.0
  %245 = vmatprep.subr.mxu0 0.0
  %246 = vmatpush1.msra.mxu0 0.0
  %247 = vmatprep.subr.mxu0 0.0
  %248 = vmatpush1.msra.mxu0 0.0
  %249 = vmatprep.subr.mxu0 0.0
  %250 = vmatpush1.msra.mxu0 0.0
  %251 = vmatprep.subr.mxu0 0.0
  %252 = vmatpush1.msra.mxu0 0.0
  %253 = vmatprep.mubr.f32.mxu0 0.0
  %254 = vmatmul.mubr.f32.gmra.mrb[0].mxu0 %v24
  %v255 = vpop.f32.mrb[0].mxu0
  %v256 = vadd.f32 0.0, %v255
  %v257 = vpop.f32.mrb[0].mxu0
  %258 = vmatprep.mubr.f32.mxu0 0.0
  %259 = vmatmul.mubr.f32.gmra.mrb[0].mxu0 %v27
  %v260 = vpop.f32.mrb[0].mxu0
  %v261 = vadd.f32 0.0, %v260
  %v262 = vpop.f32.mrb[0].mxu0
  %263 = vdwg.mxu0
  %265 = vrot.lane.b32.xlu0 %v100, 1
  %v266 = vpop.permute.xlu0 %265
  %267 = vrot.lane.b32.xlu0 %v105, 1
  %v268 = vpop.permute.xlu0 %267
  %272 = vrot.lane.b32.xlu0 %v178, 2
  %v273 = vpop.permute.xlu0 %272
  %274 = vrot.lane.b32.xlu0 %v183, 2
  %v275 = vpop.permute.xlu0 %274
  %280 = vrot.lane.b32.xlu0 %v256, 3
  %v281 = vpop.permute.xlu0 %280
  %282 = vrot.lane.b32.xlu0 %v261, 3
  %v283 = vpop.permute.xlu0 %282
  %vm286 = vcmask 7168
  %v287 = vsel %vm286, %v16, %v266
  %v288 = vsel %vm286, %v17, %v268
  %vm289 = vcmask 15360
  %v290 = vsel %vm289, %v287, %v273
  %v291 = vsel %vm289, %v288, %v275
  %vm292 = vcmask 23552
  %v293 = vsel %vm292, %v290, %v281
  %v294 = vsel %vm292, %v291, %v283
  %vm295 = vcmask 31744
  %v296 = vsel %vm295, %v293, 1.0
  %v297 = vsel %vm295, %v294, 1.0
  %vm298 = vcmask 39936
  %v300 = vsel %vm298, %v296, 0
  %v303 = vsel %vm298, %v297, 0
  %vm305 = vcmask 1044480
  %v307 = vsel %vm305, %v18, 0
  %309 = vmatprep.subr.mxu0 0.0
  %310 = vmatpush1.msra.mxu0 %v307
  %311 = vmatprep.subr.mxu0 0.0
  %312 = vmatpush1.msra.mxu0 0.0
  %313 = vmatprep.subr.mxu0 0.0
  %314 = vmatpush1.msra.mxu0 0.0
  %315 = vmatprep.subr.mxu0 0.0
  %316 = vmatpush1.msra.mxu0 0.0
  %317 = vmatprep.subr.mxu0 0.0
  %318 = vmatpush1.msra.mxu0 0.0
  %319 = vmatprep.subr.mxu0 0.0
  %320 = vmatpush1.msra.mxu0 0.0
  %321 = vmatprep.subr.mxu0 0.0
  %322 = vmatpush1.msra.mxu0 0.0
  %323 = vmatprep.subr.mxu0 0.0
  %324 = vmatpush1.msra.mxu0 0.0
  %325 = vmatprep.subr.mxu0 0.0
  %326 = vmatpush1.msra.mxu0 0.0
  %327 = vmatprep.subr.mxu0 0.0
  %328 = vmatpush1.msra.mxu0 0.0
  %329 = vmatprep.subr.mxu0 0.0
  %330 = vmatpush1.msra.mxu0 0.0
  %331 = vmatprep.subr.mxu0 0.0
  %332 = vmatpush1.msra.mxu0 0.0
  %333 = vmatprep.subr.mxu0 0.0
  %334 = vmatpush1.msra.mxu0 0.0
  %335 = vmatprep.subr.mxu0 0.0
  %336 = vmatpush1.msra.mxu0 0.0
  %337 = vmatprep.subr.mxu0 0.0
  %338 = vmatpush1.msra.mxu0 0.0
  %339 = vmatprep.subr.mxu0 0.0
  %340 = vmatpush1.msra.mxu0 0.0
  %341 = vmatprep.subr.mxu0 0.0
  %342 = vmatpush1.msra.mxu0 0.0
  %343 = vmatprep.subr.mxu0 0.0
  %344 = vmatpush1.msra.mxu0 0.0
  %345 = vmatprep.subr.mxu0 0.0
  %346 = vmatpush1.msra.mxu0 0.0
  %347 = vmatprep.subr.mxu0 0.0
  %348 = vmatpush1.msra.mxu0 0.0
  %349 = vmatprep.subr.mxu0 0.0
  %350 = vmatpush1.msra.mxu0 0.0
  %351 = vmatprep.subr.mxu0 0.0
  %352 = vmatpush1.msra.mxu0 0.0
  %353 = vmatprep.subr.mxu0 0.0
  %354 = vmatpush1.msra.mxu0 0.0
  %355 = vmatprep.subr.mxu0 0.0
  %356 = vmatpush1.msra.mxu0 0.0
  %357 = vmatprep.subr.mxu0 0.0
  %358 = vmatpush1.msra.mxu0 0.0
  %359 = vmatprep.subr.mxu0 0.0
  %360 = vmatpush1.msra.mxu0 0.0
  %361 = vmatprep.subr.mxu0 0.0
  %362 = vmatpush1.msra.mxu0 0.0
  %363 = vmatprep.subr.mxu0 0.0
  %364 = vmatpush1.msra.mxu0 0.0
  %365 = vmatprep.subr.mxu0 0.0
  %366 = vmatpush1.msra.mxu0 0.0
  %367 = vmatprep.subr.mxu0 0.0
  %368 = vmatpush1.msra.mxu0 0.0
  %369 = vmatprep.subr.mxu0 0.0
  %370 = vmatpush1.msra.mxu0 0.0
  %371 = vmatprep.subr.mxu0 0.0
  %372 = vmatpush1.msra.mxu0 0.0
  %373 = vmatprep.mubr.f32.mxu0 0.0
  %374 = vmatmul.mubr.f32.gmra.mrb[0].mxu0 %v300
  %v375 = vpop.f32.mrb[0].mxu0
  %v376 = vadd.f32 0.0, %v375
  %v377 = vpop.f32.mrb[0].mxu0
  %378 = vmatprep.mubr.f32.mxu0 0.0
  %379 = vmatmul.mubr.f32.gmra.mrb[0].mxu0 %v303
  %v380 = vpop.f32.mrb[0].mxu0
  %v381 = vadd.f32 0.0, %v380
  %v382 = vpop.f32.mrb[0].mxu0
  %383 = vdwg.mxu0
  %v384 = vmax.f32 %v376, 0.0
  %v385 = vmax.f32 %v381, 0.0
  %v387 = vsel %vm29, %v385, 0
  %389 = vmatprep.subr.mxu0 0.0
  %390 = vmatpush1.msra.mxu0 %v384
  %391 = vmatprep.subr.mxu0 0.0
  %392 = vmatpush1.msra.mxu0 %v387
  %393 = vmatprep.subr.mxu0 0.0
  %394 = vmatpush1.msra.mxu0 0.0
  %395 = vmatprep.subr.mxu0 0.0
  %396 = vmatpush1.msra.mxu0 0.0
  %397 = vmatprep.subr.mxu0 0.0
  %398 = vmatpush1.msra.mxu0 0.0
  %399 = vmatprep.subr.mxu0 0.0
  %400 = vmatpush1.msra.mxu0 0.0
  %401 = vmatprep.subr.mxu0 0.0
  %402 = vmatpush1.msra.mxu0 0.0
  %403 = vmatprep.subr.mxu0 0.0
  %404 = vmatpush1.msra.mxu0 0.0
  %405 = vmatprep.subr.mxu0 0.0
  %406 = vmatpush1.msra.mxu0 0.0
  %407 = vmatprep.subr.mxu0 0.0
  %408 = vmatpush1.msra.mxu0 0.0
  %409 = vmatprep.subr.mxu0 0.0
  %410 = vmatpush1.msra.mxu0 0.0
  %411 = vmatprep.subr.mxu0 0.0
  %412 = vmatpush1.msra.mxu0 0.0
  %413 = vmatprep.subr.mxu0 0.0
  %414 = vmatpush1.msra.mxu0 0.0
  %415 = vmatprep.subr.mxu0 0.0
  %416 = vmatpush1.msra.mxu0 0.0
  %417 = vmatprep.subr.mxu0 0.0
  %418 = vmatpush1.msra.mxu0 0.0
  %419 = vmatprep.subr.mxu0 0.0
  %420 = vmatpush1.msra.mxu0 0.0
  %421 = vmatprep.subr.mxu0 0.0
  %422 = vmatpush1.msra.mxu0 0.0
  %423 = vmatprep.subr.mxu0 0.0
  %424 = vmatpush1.msra.mxu0 0.0
  %425 = vmatprep.subr.mxu0 0.0
  %426 = vmatpush1.msra.mxu0 0.0
  %427 = vmatprep.subr.mxu0 0.0
  %428 = vmatpush1.msra.mxu0 0.0
  %429 = vmatprep.subr.mxu0 0.0
  %430 = vmatpush1.msra.mxu0 0.0
  %431 = vmatprep.subr.mxu0 0.0
  %432 = vmatpush1.msra.mxu0 0.0
  %433 = vmatprep.subr.mxu0 0.0
  %434 = vmatpush1.msra.mxu0 0.0
  %435 = vmatprep.subr.mxu0 0.0
  %436 = vmatpush1.msra.mxu0 0.0
  %437 = vmatprep.subr.mxu0 0.0
  %438 = vmatpush1.msra.mxu0 0.0
  %439 = vmatprep.subr.mxu0 0.0
  %440 = vmatpush1.msra.mxu0 0.0
  %441 = vmatprep.subr.mxu0 0.0
  %442 = vmatpush1.msra.mxu0 0.0
  %443 = vmatprep.subr.mxu0 0.0
  %444 = vmatpush1.msra.mxu0 0.0
  %445 = vmatprep.subr.mxu0 0.0
  %446 = vmatpush1.msra.mxu0 0.0
  %447 = vmatprep.subr.mxu0 0.0
  %448 = vmatpush1.msra.mxu0 0.0
  %449 = vmatprep.subr.mxu0 0.0
  %450 = vmatpush1.msra.mxu0 0.0
  %451 = vmatprep.subr.mxu0 0.0
  %452 = vmatpush1.msra.mxu0 0.0
  %453 = vmatprep.mubr.f32.mxu0 0.0
  %454 = vmatmul.mubr.f32.gmra.mrb[0].mxu0 %v24
  %v455 = vpop.f32.mrb[0].mxu0
  %v456 = vadd.f32 0.0, %v455
  %v457 = vpop.f32.mrb[0].mxu0
  %458 = vmatprep.mubr.f32.mxu0 0.0
  %459 = vmatmul.mubr.f32.gmra.mrb[0].mxu0 %v27
  %v460 = vpop.f32.mrb[0].mxu0
  %v461 = vadd.f32 0.0, %v460
  %v462 = vpop.f32.mrb[0].mxu0
  %463 = vdwg.mxu0
  %v465 = vsel %vm29, %v461, 0
  %467 = vmatprep.subr.mxu0 0.0
  %468 = vmatpush1.msra.mxu0 %v456
  %469 = vmatprep.subr.mxu0 0.0
  %470 = vmatpush1.msra.mxu0 %v465
  %471 = vmatprep.subr.mxu0 0.0
  %472 = vmatpush1.msra.mxu0 0.0
  %473 = vmatprep.subr.mxu0 0.0
  %474 = vmatpush1.msra.mxu0 0.0
  %475 = vmatprep.subr.mxu0 0.0
  %476 = vmatpush1.msra.mxu0 0.0
  %477 = vmatprep.subr.mxu0 0.0
  %478 = vmatpush1.msra.mxu0 0.0
  %479 = vmatprep.subr.mxu0 0.0
  %480 = vmatpush1.msra.mxu0 0.0
  %481 = vmatprep.subr.mxu0 0.0
  %482 = vmatpush1.msra.mxu0 0.0
  %483 = vmatprep.subr.mxu0 0.0
  %484 = vmatpush1.msra.mxu0 0.0
  %485 = vmatprep.subr.mxu0 0.0
  %486 = vmatpush1.msra.mxu0 0.0
  %487 = vmatprep.subr.mxu0 0.0
  %488 = vmatpush1.msra.mxu0 0.0
  %489 = vmatprep.subr.mxu0 0.0
  %490 = vmatpush1.msra.mxu0 0.0
  %491 = vmatprep.subr.mxu0 0.0
  %492 = vmatpush1.msra.mxu0 0.0
  %493 = vmatprep.subr.mxu0 0.0
  %494 = vmatpush1.msra.mxu0 0.0
  %495 = vmatprep.subr.mxu0 0.0
  %496 = vmatpush1.msra.mxu0 0.0
  %497 = vmatprep.subr.mxu0 0.0
  %498 = vmatpush1.msra.mxu0 0.0
  %499 = vmatprep.subr.mxu0 0.0
  %500 = vmatpush1.msra.mxu0 0.0
  %501 = vmatprep.subr.mxu0 0.0
  %502 = vmatpush1.msra.mxu0 0.0
  %503 = vmatprep.subr.mxu0 0.0
  %504 = vmatpush1.msra.mxu0 0.0
  %505 = vmatprep.subr.mxu0 0.0
  %506 = vmatpush1.msra.mxu0 0.0
  %507 = vmatprep.subr.mxu0 0.0
  %508 = vmatpush1.msra.mxu0 0.0
  %509 = vmatprep.subr.mxu0 0.0
  %510 = vmatpush1.msra.mxu0 0.0
  %511 = vmatprep.subr.mxu0 0.0
  %512 = vmatpush1.msra.mxu0 0.0
  %513 = vmatprep.subr.mxu0 0.0
  %514 = vmatpush1.msra.mxu0 0.0
  %515 = vmatprep.subr.mxu0 0.0
  %516 = vmatpush1.msra.mxu0 0.0
  %517 = vmatprep.subr.mxu0 0.0
  %518 = vmatpush1.msra.mxu0 0.0
  %519 = vmatprep.subr.mxu0 0.0
  %520 = vmatpush1.msra.mxu0 0.0
  %521 = vmatprep.subr.mxu0 0.0
  %522 = vmatpush1.msra.mxu0 0.0
  %523 = vmatprep.subr.mxu0 0.0
  %524 = vmatpush1.msra.mxu0 0.0
  %525 = vmatprep.subr.mxu0 0.0
  %526 = vmatpush1.msra.mxu0 0.0
  %527 = vmatprep.subr.mxu0 0.0
  %528 = vmatpush1.msra.mxu0 0.0
  %529 = vmatprep.subr.mxu0 0.0
  %530 = vmatpush1.msra.mxu0 0.0
  %531 = vmatprep.mubr.f32.mxu0 0.0
  %532 = vmatmul.mubr.f32.gmra.mrb[0].mxu0 %v24
  %v533 = vpop.f32.mrb[0].mxu0
  %v534 = vadd.f32 0.0, %v533
  %v535 = vpop.f32.mrb[0].mxu0
  %536 = vmatprep.mubr.f32.mxu0 0.0
  %537 = vmatmul.mubr.f32.gmra.mrb[0].mxu0 %v27
  %v538 = vpop.f32.mrb[0].mxu0
  %v539 = vadd.f32 0.0, %v538
  %v540 = vpop.f32.mrb[0].mxu0
  %541 = vdwg.mxu0
  %v543 = vsel %vm29, %v539, 0
  %545 = vmatprep.subr.mxu0 0.0
  %546 = vmatpush1.msra.mxu0 %v534
  %547 = vmatprep.subr.mxu0 0.0
  %548 = vmatpush1.msra.mxu0 %v543
  %549 = vmatprep.subr.mxu0 0.0
  %550 = vmatpush1.msra.mxu0 0.0
  %551 = vmatprep.subr.mxu0 0.0
  %552 = vmatpush1.msra.mxu0 0.0
  %553 = vmatprep.subr.mxu0 0.0
  %554 = vmatpush1.msra.mxu0 0.0
  %555 = vmatprep.subr.mxu0 0.0
  %556 = vmatpush1.msra.mxu0 0.0
  %557 = vmatprep.subr.mxu0 0.0
  %558 = vmatpush1.msra.mxu0 0.0
  %559 = vmatprep.subr.mxu0 0.0
  %560 = vmatpush1.msra.mxu0 0.0
  %561 = vmatprep.subr.mxu0 0.0
  %562 = vmatpush1.msra.mxu0 0.0
  %563 = vmatprep.subr.mxu0 0.0
  %564 = vmatpush1.msra.mxu0 0.0
  %565 = vmatprep.subr.mxu0 0.0
  %566 = vmatpush1.msra.mxu0 0.0
  %567 = vmatprep.subr.mxu0 0.0
  %568 = vmatpush1.msra.mxu0 0.0
  %569 = vmatprep.subr.mxu0 0.0
  %570 = vmatpush1.msra.mxu0 0.0
  %571 = vmatprep.subr.mxu0 0.0
  %572 = vmatpush1.msra.mxu0 0.0
  %573 = vmatprep.subr.mxu0 0.0
  %574 = vmatpush1.msra.mxu0 0.0
  %575 = vmatprep.subr.mxu0 0.0
  %576 = vmatpush1.msra.mxu0 0.0
  %577 = vmatprep.subr.mxu0 0.0
  %578 = vmatpush1.msra.mxu0 0.0
  %579 = vmatprep.subr.mxu0 0.0
  %580 = vmatpush1.msra.mxu0 0.0
  %581 = vmatprep.subr.mxu0 0.0
  %582 = vmatpush1.msra.mxu0 0.0
  %583 = vmatprep.subr.mxu0 0.0
  %584 = vmatpush1.msra.mxu0 0.0
  %585 = vmatprep.subr.mxu0 0.0
  %586 = vmatpush1.msra.mxu0 0.0
  %587 = vmatprep.subr.mxu0 0.0
  %588 = vmatpush1.msra.mxu0 0.0
  %589 = vmatprep.subr.mxu0 0.0
  %590 = vmatpush1.msra.mxu0 0.0
  %591 = vmatprep.subr.mxu0 0.0
  %592 = vmatpush1.msra.mxu0 0.0
  %593 = vmatprep.subr.mxu0 0.0
  %594 = vmatpush1.msra.mxu0 0.0
  %595 = vmatprep.subr.mxu0 0.0
  %596 = vmatpush1.msra.mxu0 0.0
  %597 = vmatprep.subr.mxu0 0.0
  %598 = vmatpush1.msra.mxu0 0.0
  %599 = vmatprep.subr.mxu0 0.0
  %600 = vmatpush1.msra.mxu0 0.0
  %601 = vmatprep.subr.mxu0 0.0
  %602 = vmatpush1.msra.mxu0 0.0
  %603 = vmatprep.subr.mxu0 0.0
  %604 = vmatpush1.msra.mxu0 0.0
  %605 = vmatprep.subr.mxu0 0.0
  %606 = vmatpush1.msra.mxu0 0.0
  %607 = vmatprep.subr.mxu0 0.0
  %608 = vmatpush1.msra.mxu0 0.0
  %609 = vmatprep.mubr.f32.mxu0 0.0
  %610 = vmatmul.mubr.f32.gmra.mrb[0].mxu0 %v24
  %v611 = vpop.f32.mrb[0].mxu0
  %v612 = vadd.f32 0.0, %v611
  %v613 = vpop.f32.mrb[0].mxu0
  %614 = vmatprep.mubr.f32.mxu0 0.0
  %615 = vmatmul.mubr.f32.gmra.mrb[0].mxu0 %v27
  %v616 = vpop.f32.mrb[0].mxu0
  %v617 = vadd.f32 0.0, %v616
  %v618 = vpop.f32.mrb[0].mxu0
  %619 = vdwg.mxu0
  %621 = vrot.lane.b32.xlu0 %v456, 4
  %v622 = vpop.permute.xlu0 %621
  %623 = vrot.lane.b32.xlu0 %v461, 4
  %v624 = vpop.permute.xlu0 %623
  %628 = vrot.lane.b32.xlu0 %v534, 8
  %v629 = vpop.permute.xlu0 %628
  %630 = vrot.lane.b32.xlu0 %v539, 8
  %v631 = vpop.permute.xlu0 %630
  %636 = vrot.lane.b32.xlu0 %v612, 12
  %v637 = vpop.permute.xlu0 %636
  %638 = vrot.lane.b32.xlu0 %v617, 12
  %v639 = vpop.permute.xlu0 %638
  %v642 = vsel %vm295, %v384, %v622
  %v643 = vsel %vm295, %v385, %v624
  %vm644 = vcmask 64512
  %v645 = vsel %vm644, %v642, %v629
  %v646 = vsel %vm644, %v643, %v631
  %vm647 = vcmask 97280
  %v648 = vsel %vm647, %v645, %v637
  %v649 = vsel %vm647, %v646, %v639
  %vm650 = vcmask 130048
  %v651 = vsel %vm650, %v648, 1.0
  %v652 = vsel %vm650, %v649, 1.0
  %vm653 = vcmask 138240
  %v655 = vsel %vm653, %v651, 0
  %v658 = vsel %vm653, %v652, 0
  %vm660 = vcmask 1040384
  %v662 = vsel %vm660, %v21, 0
  %664 = vmatprep.subr.mxu0 0.0
  %665 = vmatpush1.msra.mxu0 %v19
  %666 = vmatprep.subr.mxu0 0.0
  %667 = vmatpush1.msra.mxu0 %v20
  %668 = vmatprep.subr.mxu0 0.0
  %669 = vmatpush1.msra.mxu0 %v662
  %670 = vmatprep.subr.mxu0 0.0
  %671 = vmatpush1.msra.mxu0 0.0
  %672 = vmatprep.subr.mxu0 0.0
  %673 = vmatpush1.msra.mxu0 0.0
  %674 = vmatprep.subr.mxu0 0.0
  %675 = vmatpush1.msra.mxu0 0.0
  %676 = vmatprep.subr.mxu0 0.0
  %677 = vmatpush1.msra.mxu0 0.0
  %678 = vmatprep.subr.mxu0 0.0
  %679 = vmatpush1.msra.mxu0 0.0
  %680 = vmatprep.subr.mxu0 0.0
  %681 = vmatpush1.msra.mxu0 0.0
  %682 = vmatprep.subr.mxu0 0.0
  %683 = vmatpush1.msra.mxu0 0.0
  %684 = vmatprep.subr.mxu0 0.0
  %685 = vmatpush1.msra.mxu0 0.0
  %686 = vmatprep.subr.mxu0 0.0
  %687 = vmatpush1.msra.mxu0 0.0
  %688 = vmatprep.subr.mxu0 0.0
  %689 = vmatpush1.msra.mxu0 0.0
  %690 = vmatprep.subr.mxu0 0.0
  %691 = vmatpush1.msra.mxu0 0.0
  %692 = vmatprep.subr.mxu0 0.0
  %693 = vmatpush1.msra.mxu0 0.0
  %694 = vmatprep.subr.mxu0 0.0
  %695 = vmatpush1.msra.mxu0 0.0
  %696 = vmatprep.subr.mxu0 0.0
  %697 = vmatpush1.msra.mxu0 0.0
  %698 = vmatprep.subr.mxu0 0.0
  %699 = vmatpush1.msra.mxu0 0.0
  %700 = vmatprep.subr.mxu0 0.0
  %701 = vmatpush1.msra.mxu0 0.0
  %702 = vmatprep.subr.mxu0 0.0
  %703 = vmatpush1.msra.mxu0 0.0
  %704 = vmatprep.subr.mxu0 0.0
  %705 = vmatpush1.msra.mxu0 0.0
  %706 = vmatprep.subr.mxu0 0.0
  %707 = vmatpush1.msra.mxu0 0.0
  %708 = vmatprep.subr.mxu0 0.0
  %709 = vmatpush1.msra.mxu0 0.0
  %710 = vmatprep.subr.mxu0 0.0
  %711 = vmatpush1.msra.mxu0 0.0
  %712 = vmatprep.subr.mxu0 0.0
  %713 = vmatpush1.msra.mxu0 0.0
  %714 = vmatprep.subr.mxu0 0.0
  %715 = vmatpush1.msra.mxu0 0.0
  %716 = vmatprep.subr.mxu0 0.0
  %717 = vmatpush1.msra.mxu0 0.0
  %718 = vmatprep.subr.mxu0 0.0
  %719 = vmatpush1.msra.mxu0 0.0
  %720 = vmatprep.subr.mxu0 0.0
  %721 = vmatpush1.msra.mxu0 0.0
  %722 = vmatprep.subr.mxu0 0.0
  %723 = vmatpush1.msra.mxu0 0.0
  %724 = vmatprep.subr.mxu0 0.0
  %725 = vmatpush1.msra.mxu0 0.0
  %726 = vmatprep.subr.mxu0 0.0
  %727 = vmatpush1.msra.mxu0 0.0
  %728 = vmatprep.mubr.f32.mxu0 0.0
  %729 = vmatmul.mubr.f32.gmra.mrb[0].mxu0 %v655
  %v730 = vpop.f32.mrb[0].mxu0
  %v731 = vadd.f32 0.0, %v730
  %v732 = vpop.f32.mrb[0].mxu0
  %733 = vmatprep.mubr.f32.mxu0 0.0
  %734 = vmatmul.mubr.f32.gmra.mrb[0].mxu0 %v658
  %v735 = vpop.f32.mrb[0].mxu0
  %v736 = vadd.f32 0.0, %v735
  %v737 = vpop.f32.mrb[0].mxu0
  %738 = vdwg.mxu0
  %v739 = vxor.u32 %v731, 2147483648
  %v740 = vxor.u32 %v736, 2147483648
  %v741 = vmul.f32 %v739, 1.442695
  %v742 = vpow.pop %v741
  %v743 = vmul.f32 %v740, 1.442695
  %v744 = vpow.pop %v743
  %v745 = vadd.f32 %v742, 1.0
  %v746 = vadd.f32 %v744, 1.0
  %v747 = vrcp.pop %v745
  %v748 = vmul.f32 1.0, %v747
  %v749 = vrcp.pop %v746
  %v750 = vmul.f32 1.0, %v749
  %751 = vst.msk [vmem:[%s3] sm:$0xff] %vm286, %v748
  %vm752 = vcmask 1024
  %753 = vst.msk [vmem:[%s3 + $0x8] sm:$0x3] %vm752, %v750
  // Predicated region
  $region14: #{fwd.1} parent=0 // pred_check
    _
  $region15: #{fwd.1} parent=0 // pred_check_branch
    %755 = sbr.rel (0) target = $region17
  $region16: #{fwd.1} parent=0 // pred_region
    _
  $region17: #{fwd.1} parent=0 // pred_fallthru
    _
  // Predicated region
  $region18: #{fwd.1} parent=0 // pred_check
    _
  $region19: #{fwd.1} parent=0 // pred_check_branch
    %757 = sbr.rel (0) target = $region21
  $region20: #{fwd.1} parent=0 // pred_region
    _
  $region21: #{fwd.1} parent=0 // pred_fallthru
    _

</llo_original>
